<compile_context>
chip_gen: v5e
topology: v5e:2x2
jax: 0.10.0
libtpu: 0.0.40
codegen_flags: <defaults>
</compile_context>

<pallas_src>
import jax
import jax.numpy as jnp
from jax.experimental import pallas as pl
from jax.experimental.pallas import tpu as pltpu


def _handshaking_cat_kernel(seq_ref, wcat_ref, b_ref, out_ref, a_scratch):
    # seq_ref  : (1, S, H)       one batch element's hiddens
    # wcat_ref : (H, 2H)         [W1^T | W2^T]  so seq @ wcat = [h@W1^T | h@W2^T]
    # b_ref    : (1, H)          bias
    # out_ref  : (1, TI, S, H)   output slab for i-rows [it*TI, (it+1)*TI)
    # a_scratch: (S, H) VMEM     staging buffer for dynamic i-slice
    S = seq_ref.shape[1]
    H = seq_ref.shape[2]
    TI = out_ref.shape[1]
    it = pl.program_id(1)

    seq = seq_ref[0]                                            # (S, H)
    # One fused MXU op for both halves of the concat projection.
    ac = jnp.dot(seq, wcat_ref[...],
                 preferred_element_type=jnp.float32)            # (S, 2H)
    a_scratch[...] = ac[:, :H]                                  # h_i @ W1^T
    cb = ac[:, H:] + b_ref[...]                                 # h_j @ W2^T + bias (S, H)

    start = pl.multiple_of(it * TI, TI)
    a_tile = a_scratch[pl.ds(start, TI), :]                     # (TI, H)

    # Vectorized over the whole tile; single large store.
    slab = jnp.tanh(a_tile[:, None, :] + cb[None, :, :])        # (TI, S, H)
    out_ref[0] = slab.astype(out_ref.dtype)


def handshaking_kernel_cat(seq_hiddens, combine_w, combine_b,
                           *, tile_bytes_budget=2 * 1024 * 1024):
    """
    seq_hiddens: (B, S, H) float32
    combine_w  : (H, 2H)   float32   (torch nn.Linear(2H, H).weight layout)
    combine_b  : (H,)      float32
    returns    : (B, S*S, H) float32
    """
    B, S, H = seq_hiddens.shape
    itemsize = jnp.dtype(seq_hiddens.dtype).itemsize

    # Fused weight: seq @ wcat = [h @ W1^T | h @ W2^T]
    w1t = combine_w[:, :H].T                      # (H, H)
    w2t = combine_w[:, H:].T                      # (H, H)
    wcat = jnp.concatenate([w1t, w2t], axis=1)    # (H, 2H)
    bias = combine_b.reshape(1, H)

    # Pick TI = largest divisor of S whose output tile fits the per-tile VMEM budget.
    TI = 1
    for ti in range(1, S + 1):
        if S % ti == 0 and ti * S * H * itemsize <= tile_bytes_budget:
            TI = ti
    num_i_tiles = S // TI

    # Explicit scoped-VMEM budget: double-buffered in/out blocks + weights + scratch,
    # with 2x headroom, capped so it stays sane on v7x (64 MiB physical VMEM).
    est = 2 * (S * H + H * 2 * H + H + TI * S * H) * itemsize + S * H * 4
    vmem_limit = int(min(max(2 * est + (4 << 20), 16 << 20), 64 << 20))

    grid_spec = pltpu.PrefetchScalarGridSpec(
        num_scalar_prefetch=0,
        grid=(B, num_i_tiles),
        in_specs=[
            pl.BlockSpec((1, S, H), lambda b, it: (b, 0, 0)),
            pl.BlockSpec((H, 2 * H), lambda b, it: (0, 0)),
            pl.BlockSpec((1, H), lambda b, it: (0, 0)),
        ],
        out_specs=pl.BlockSpec((1, TI, S, H), lambda b, it: (b, it, 0, 0)),
        scratch_shapes=[pltpu.VMEM((S, H), jnp.float32)],
    )

    out4 = pl.pallas_call(
        _handshaking_cat_kernel,
        out_shape=jax.ShapeDtypeStruct((B, S, S, H), seq_hiddens.dtype),
        grid_spec=grid_spec,
        compiler_params=pltpu.CompilerParams(
            dimension_semantics=("parallel", "parallel"),
            vmem_limit_bytes=vmem_limit,
        ),
    )(seq_hiddens, wcat, bias)

    # out4[b, i, j, :] == shaking[b, i*S + j, :]  -> free row-major reshape.
    return out4.reshape(B, S * S, H)


def handshaking_ref(seq_hiddens, combine_w, combine_b):
    """Pure-JAX reference mirroring the PyTorch forward for shaking_type='cat'."""
    B, S, H = seq_hiddens.shape
    outs = []
    for i in range(S):
        rep = jnp.broadcast_to(seq_hiddens[:, i:i + 1, :], (B, S, H))
        cat = jnp.concatenate([rep, seq_hiddens], axis=-1)           # (B, S, 2H)
        outs.append(jnp.tanh(cat @ combine_w.T + combine_b))         # (B, S, H)
    return jnp.concatenate(outs, axis=1)                             # (B, S*S, H)


if __name__ == "__main__":
    B, S, H = 2, 8, 32

    key = jax.random.PRNGKey(0)
    k_x, k_w, k_b = jax.random.split(key, 3)

    seq_hiddens = jax.random.normal(k_x, (B, S, H), dtype=jnp.float32)
    # Synthetic params for nn.Linear(2H, H): weight (H, 2H), bias (H,)
    bound = 1.0 / (2 * H) ** 0.5
    combine_w = jax.random.uniform(k_w, (H, 2 * H), minval=-bound, maxval=bound,
                                   dtype=jnp.float32)
    combine_b = jax.random.uniform(k_b, (H,), minval=-bound, maxval=bound,
                                   dtype=jnp.float32)

    out = handshaking_kernel_cat(seq_hiddens, combine_w, combine_b)
    out = jax.block_until_ready(out)

    ref = handshaking_ref(seq_hiddens, combine_w, combine_b)
    assert out.shape == (B, S * S, H), out.shape
    assert jnp.allclose(out, ref, atol=1e-5, rtol=1e-5), float(jnp.max(jnp.abs(out - ref)))

    print("KERNEL_OK")
</pallas_src>

<mosaic_0001>
module attributes {stable_mosaic.version = 11 : i64} {
  func.func @_handshaking_cat_kernel(%arg0: i32, %arg1: i32, %arg2: memref<1x8x32xf32, #tpu.memory_space<vmem>>, %arg3: memref<32x64xf32, #tpu.memory_space<vmem>>, %arg4: memref<1x32xf32, #tpu.memory_space<vmem>>, %arg5: memref<1x8x8x32xf32, #tpu.memory_space<vmem>>, %arg6: memref<8x32xf32, #tpu.memory_space<vmem>>) attributes {dimension_semantics = [#tpu.dimension_semantics<parallel>, #tpu.dimension_semantics<parallel>], iteration_bounds = array<i64: 2, 1>, scalar_prefetch = 0 : i64, scratch_operands = 1 : i64, tpu.core_type = #tpu.core_type<tc>, window_params = [{transform_indices = @transform_0, window_bounds = array<i64: 1, 8, 32>}, {pipeline_mode = #tpu.pipeline_mode<synchronous>, transform_indices = @transform_1, window_bounds = array<i64: 32, 64>}, {pipeline_mode = #tpu.pipeline_mode<synchronous>, transform_indices = @transform_2, window_bounds = array<i64: 1, 32>}, {transform_indices = @transform_3, window_bounds = array<i64: 1, 8, 8, 32>}]} {
    %c0 = arith.constant 0 : index
    %c0_0 = arith.constant 0 : index
    %c0_1 = arith.constant 0 : index
    %0 = vector.load %arg2[%c0, %c0_0, %c0_1] : memref<1x8x32xf32, #tpu.memory_space<vmem>>, vector<1x8x32xf32>
    %1 = vector.shape_cast %0 : vector<1x8x32xf32> to vector<8x32xf32>
    %c0_2 = arith.constant 0 : index
    %c0_3 = arith.constant 0 : index
    %2 = vector.load %arg3[%c0_2, %c0_3] : memref<32x64xf32, #tpu.memory_space<vmem>>, vector<32x64xf32>
    %cst = arith.constant dense<0.000000e+00> : vector<8x64xf32>
    %3 = tpu.matmul %1, %2, %cst {dimension_numbers = #tpu.dot_dimension_numbers<[1], [0], [0], [1], [0, 0, 1, 1], [], []>} : vector<8x32xf32>, vector<32x64xf32>, vector<8x64xf32> -> vector<8x64xf32>
    %4 = vector.extract_strided_slice %3 {offsets = [0, 0], sizes = [8, 32], strides = [1, 1]} : vector<8x64xf32> to vector<8x32xf32>
    %c0_4 = arith.constant 0 : index
    %c0_5 = arith.constant 0 : index
    %5 = vector.load %arg6[%c0_4, %c0_5] : memref<8x32xf32, #tpu.memory_space<vmem>>, vector<8x32xf32>
    tpu.vector_store %arg6[%c0_4, %c0_5], %4 {strides = array<i32>} : memref<8x32xf32, #tpu.memory_space<vmem>>, vector<8x32xf32>,
    %6 = vector.extract_strided_slice %3 {offsets = [0, 32], sizes = [8, 32], strides = [1, 1]} : vector<8x64xf32> to vector<8x32xf32>
    %c0_6 = arith.constant 0 : index
    %c0_7 = arith.constant 0 : index
    %7 = vector.load %arg4[%c0_6, %c0_7] : memref<1x32xf32, #tpu.memory_space<vmem>>, vector<1x32xf32>
    %8 = vector.broadcast %7 : vector<1x32xf32> to vector<8x32xf32>
    %9 = arith.addf %6, %8 : vector<8x32xf32>
    %c8_i32 = arith.constant 8 : i32
    %10 = arith.muli %arg1, %c8_i32 : i32
    %11 = tpu.assume_multiple %10, 8 : i32
    %12 = arith.index_cast %11 : i32 to index
    %c0_8 = arith.constant 0 : index
    %13 = vector.load %arg6[%12, %c0_8] : memref<8x32xf32, #tpu.memory_space<vmem>>, vector<8x32xf32>
    %14 = vector.shape_cast %13 : vector<8x32xf32> to vector<8x1x32xf32>
    %15 = vector.shape_cast %9 : vector<8x32xf32> to vector<1x8x32xf32>
    %16 = vector.broadcast %14 : vector<8x1x32xf32> to vector<8x8x32xf32>
    %17 = vector.broadcast %15 : vector<1x8x32xf32> to vector<8x8x32xf32>
    %18 = arith.addf %16, %17 : vector<8x8x32xf32>
    %19 = math.tanh %18 : vector<8x8x32xf32>
    %c0_9 = arith.constant 0 : index
    %c0_10 = arith.constant 0 : index
    %c0_11 = arith.constant 0 : index
    %c0_12 = arith.constant 0 : index
    %20 = vector.load %arg5[%c0_9, %c0_10, %c0_11, %c0_12] : memref<1x8x8x32xf32, #tpu.memory_space<vmem>>, vector<1x8x8x32xf32>
    %21 = vector.shape_cast %20 : vector<1x8x8x32xf32> to vector<8x8x32xf32>
    %22 = vector.shape_cast %19 : vector<8x8x32xf32> to vector<1x8x8x32xf32>
    tpu.vector_store %arg5[%c0_9, %c0_10, %c0_11, %c0_12], %22 {strides = array<i32>} : memref<1x8x8x32xf32, #tpu.memory_space<vmem>>, vector<1x8x8x32xf32>,
    return
  }
  func.func @transform_0(%arg0: i32, %arg1: i32) -> (i32, i32, i32) {
    %c0_i32 = arith.constant 0 : i32
    %c0_i32_0 = arith.constant 0 : i32
    %c0_i32_1 = arith.constant 0 : i32
    return %arg0, %c0_i32, %c0_i32_0 : i32, i32, i32
  }
  func.func @transform_1(%arg0: i32, %arg1: i32) -> (i32, i32) {
    %c0_i32 = arith.constant 0 : i32
    %c0_i32_0 = arith.constant 0 : i32
    %c0_i32_1 = arith.constant 0 : i32
    return %c0_i32, %c0_i32_0 : i32, i32
  }
  func.func @transform_2(%arg0: i32, %arg1: i32) -> (i32, i32) {
    %c0_i32 = arith.constant 0 : i32
    %c0_i32_0 = arith.constant 0 : i32
    %c0_i32_1 = arith.constant 0 : i32
    return %c0_i32, %c0_i32_0 : i32, i32
  }
  func.func @transform_3(%arg0: i32, %arg1: i32) -> (i32, i32, i32, i32) {
    %c0_i32 = arith.constant 0 : i32
    %c0_i32_0 = arith.constant 0 : i32
    %c0_i32_1 = arith.constant 0 : i32
    return %arg0, %arg1, %c0_i32, %c0_i32_0 : i32, i32, i32, i32
  }
}

</mosaic_0001>

<llo_original>
// kernel: tpu_custom_call.1
$region0: #{tpu_custom_call.1}
  #allocation0 [shape = 'u32[]', space=smem, size = 0x4, offset = 0x4, fixed_abs, tag = 'smem constant byte address 0x4 - core index']
  #allocation1 [shape = 'u32[72,128]{1,0:T(1,128)}', space=vmem, size = 0x9000, scoped, tag = 'internal scratch']
  #allocation2 [shape = 'f32[8,32]{1,0:T(8,128)}', space=vmem, size = 0x1000, scoped, tag = 'scratch operand']
  %s0 = inlined_call_operand.hbm [shape: f32[2,8,32], index: 0, kind: input, shape index: {}]
  %s1 = inlined_call_operand.hbm [shape: f32[32,64], index: 1, kind: input, shape index: {}]
  %s2 = inlined_call_operand.vmem [shape: f32[1,32], index: 2, kind: input, shape index: {}]
  %s3 = inlined_call_operand.hbm [shape: f32[2,8,8,32], index: 3, kind: output, shape index: {}]
  %s4 = sld [smem:[#allocation0]]
  $region53: #{tpu_custom_call.1} parent=0
    _
  %s6 = ssub.s32 1, %s4
  %s7 = scalar_select 0, %s6, %s4
  $region1: #{tpu_custom_call.1} parent=0
    #allocation3 [shape = 'u8[8192]{0}', space=vmem, size = 0x2000, scoped, tag = 'input window, operand 0']
    #allocation4 [shape = 's32[2]{0}', space=sflag, size = 0x8, scoped, tag = 'scoped memory for tpu_custom_call.1']
    #allocation5 [shape = 's32[2]{0}', space=sflag, size = 0x8, scoped, tag = 'scoped memory for tpu_custom_call.1']
    #allocation6 [shape = 'u8[16384]{0}', space=vmem, size = 0x4000, scoped, tag = 'input window, operand 1, single buffered']
    #allocation7 [shape = 's32[1]{0}', space=sflag, size = 0x4, scoped, tag = 'scoped memory for tpu_custom_call.1']
    #allocation8 [shape = 'u8[65536]{0}', space=vmem, size = 0x10000, scoped, tag = 'output window, operand 0']
    %8 = vsyncpa [#allocation4], 0
    %s9 = scalar_lea.sflag [#allocation4], 1
    %10 = vsyncpa %s9, 0
    %11 = vsyncpa [#allocation7], 0
    %12 = vsyncpa [#allocation5], 0
    %s13 = scalar_lea.sflag [#allocation5], 1
    %14 = vsyncpa %s13, 0
    loop: start=0, step=1, limit=4
    $region2: #{tpu_custom_call.1} parent=1 // loop_pre_header
      _
    $region3: #{tpu_custom_call.1} parent=1 // loop_header
      %s16 = sphi 0, %s20
      %p17 = scmp.ge.s32.totalorder %s16, 4
      %s23 = sphi 0, %s35
      %s24 = sphi 0, %s31
      %s25 = sphi 0, %s23
      %s26 = sphi 0, %s24
      %s27 = sphi 0, %s25
      %s28 = sphi 0, %s26
      %s38 = sphi 0, %s40
      %s41 = sphi 0, %s38
      %s42 = sphi 0, %s41
      %s58 = sphi 0, %s42
      %s62 = sphi 0, %s62
      %s64 = sphi 0, %s62
      %s65 = sphi 0, %s64
      %s79 = sphi 0, %s65
      %s83 = sphi 0, %s83
      %s85 = sphi 0, %s83
      %s86 = sphi 0, %s85
      %s100 = sphi 0, %s86
      %s108 = sphi 0, %s110
      %s111 = sphi 0, %s108
      %s112 = sphi 0, %s111
      %s128 = sphi 0, %s112
    $region4: #{tpu_custom_call.1} parent=1 // loop_header_branch
      %19 = sbr.rel (%p17) target = $region8
    $region5: #{tpu_custom_call.1} parent=1 // loop_body
      %s21 = ssub.s32 %s16, 1
      %s22 = ssub.s32 %s16, 2
      %s29 = sadd.s32 1, %s24
      %p30 = scmp.ge.s32.totalorder %s29, 1
      %s31 = scalar_select %p30, 0, %s29
      %s32 = sadd.s32 1, %s23
      %s33 = scalar_select %p30, %s32, %s23
      %p34 = scmp.ge.s32.totalorder %s33, 2
      %s35 = scalar_select %p34, 0, %s33
      %s36 = ssub.s32 %s23, %s35
      %p37 = scmp.eq.s32.totalorder %s36, 0
      %s39 = sadd.s32 %s38, 1
      %s40 = scalar_select %p37, %s38, %s39
      %p43 = pneg %p37
      %p44 = scmp.eq.s32.totalorder %s16, 1
      %p45 = por %p43, %p44
      %p46 = scmp.ne.s32.totalorder %s38, %s41
      %p47 = scmp.eq.s32.totalorder %s16, 0
      %p48 = por %p46, %p47
      %p49 = scmp.ne.s32.totalorder %s38, %s41
      %p50 = scmp.eq.s32.totalorder %s21, 1
      %p51 = por %p49, %p50
      %p52 = scmp.ne.s32.totalorder %s41, %s42
      %p53 = scmp.eq.s32.totalorder %s21, 0
      %p54 = por %p52, %p53
      %p55 = scmp.ne.s32.totalorder %s41, %s42
      %p56 = scmp.eq.s32.totalorder %s22, 1
      %p57 = por %p55, %p56
      %p59 = scmp.ne.s32.totalorder %s42, %s58
      %p60 = scmp.eq.s32.totalorder %s22, 0
      %p61 = por %p59, %p60
      %s63 = sadd.s32 %s62, 1
      %p66 = scmp.eq.s32.totalorder %s16, 1
      %p67 = scmp.ne.s32.totalorder %s62, %s64
      %p68 = scmp.eq.s32.totalorder %s16, 0
      %p69 = por %p67, %p68
      %p70 = scmp.ne.s32.totalorder %s62, %s64
      %p71 = scmp.eq.s32.totalorder %s21, 1
      %p72 = por %p70, %p71
      %p73 = scmp.ne.s32.totalorder %s64, %s65
      %p74 = scmp.eq.s32.totalorder %s21, 0
      %p75 = por %p73, %p74
      %p76 = scmp.ne.s32.totalorder %s64, %s65
      %p77 = scmp.eq.s32.totalorder %s22, 1
      %p78 = por %p76, %p77
      %p80 = scmp.ne.s32.totalorder %s65, %s79
      %p81 = scmp.eq.s32.totalorder %s22, 0
      %p82 = por %p80, %p81
      %s84 = sadd.s32 %s83, 1
      %p87 = scmp.eq.s32.totalorder %s16, 1
      %p88 = scmp.ne.s32.totalorder %s83, %s85
      %p89 = scmp.eq.s32.totalorder %s16, 0
      %p90 = por %p88, %p89
      %p91 = scmp.ne.s32.totalorder %s83, %s85
      %p92 = scmp.eq.s32.totalorder %s21, 1
      %p93 = por %p91, %p92
      %p94 = scmp.ne.s32.totalorder %s85, %s86
      %p95 = scmp.eq.s32.totalorder %s21, 0
      %p96 = por %p94, %p95
      %p97 = scmp.ne.s32.totalorder %s85, %s86
      %p98 = scmp.eq.s32.totalorder %s22, 1
      %p99 = por %p97, %p98
      %p101 = scmp.ne.s32.totalorder %s86, %s100
      %p102 = scmp.eq.s32.totalorder %s22, 0
      %p103 = por %p101, %p102
      %s104 = ssub.s32 %s23, %s35
      %s105 = ssub.s32 %s24, %s31
      %s106 = sor.u32 %s104, %s105
      %p107 = scmp.eq.s32.totalorder %s106, 0
      %s109 = sadd.s32 %s108, 1
      %s110 = scalar_select %p107, %s108, %s109
      %p113 = pneg %p107
      %p114 = scmp.eq.s32.totalorder %s16, 1
      %p115 = por %p113, %p114
      %p116 = scmp.ne.s32.totalorder %s108, %s111
      %p117 = scmp.eq.s32.totalorder %s16, 0
      %p118 = por %p116, %p117
      %p119 = scmp.ne.s32.totalorder %s108, %s111
      %p120 = scmp.eq.s32.totalorder %s21, 1
      %p121 = por %p119, %p120
      %p122 = scmp.ne.s32.totalorder %s111, %s112
      %p123 = scmp.eq.s32.totalorder %s21, 0
      %p124 = por %p122, %p123
      %p125 = scmp.ne.s32.totalorder %s111, %s112
      %p126 = scmp.eq.s32.totalorder %s22, 1
      %p127 = por %p125, %p126
      %p129 = scmp.ne.s32.totalorder %s112, %s128
      %p130 = scmp.eq.s32.totalorder %s22, 0
      %p131 = por %p129, %p130
      %p132 = scmp.le.s32.totalorder 1, %s16
      %p133 = scmp.lt.s32.totalorder %s16, 3
      %p134 = pnand %p132, %p133
      %p135 = pneg %p134
      // Predicated region
      $region9: #{tpu_custom_call.1} parent=5 // pred_check
        _
      $region10: #{tpu_custom_call.1} parent=5 // pred_check_branch
        %137 = sbr.rel (%p134) target = $region12
      $region11: #{tpu_custom_call.1} parent=5 // pred_region
        %s138 = ssub.s32 %s16, 1
        // Predicated region
        $region13: #{tpu_custom_call.1} parent=11 // pred_check
          %p139 = pneg %p75
        $region14: #{tpu_custom_call.1} parent=11 // pred_check_branch
          %141 = sbr.rel (%p139) target = $region16
        $region15: #{tpu_custom_call.1} parent=11 // pred_region
          %143 = vsyncadd [#allocation7], 0
          %s144 = sshll.u32 %s1, 4
          %s145 = int_to_ptr.hbm [resolvable:$true] %s144
          %s146 = sshll.u32 [#allocation6], 4
          %s147 = int_to_ptr.vmem [resolvable:$true] %s146
          %152 = dma.hbm_to_vmem [thread:$0]  %s145, 512, %s147, [#allocation7], 128, 128, 8
        $region16: #{tpu_custom_call.1} parent=11 // pred_fallthru
          _
        // Predicated region
        $region17: #{tpu_custom_call.1} parent=11 // pred_check
          %p153 = pneg %p96
        $region18: #{tpu_custom_call.1} parent=11 // pred_check_branch
          %155 = sbr.rel (%p153) target = $region20
        $region19: #{tpu_custom_call.1} parent=11 // pred_region
          _
        $region20: #{tpu_custom_call.1} parent=11 // pred_fallthru
          _
      $region12: #{tpu_custom_call.1} parent=5 // pred_fallthru
        _
      %p156 = scmp.lt.s32.totalorder %s16, 2
      // Predicated region
      $region21: #{tpu_custom_call.1} parent=5 // pred_check
        %p157 = pneg %p156
      $region22: #{tpu_custom_call.1} parent=5 // pred_check_branch
        %159 = sbr.rel (%p157) target = $region24
      $region23: #{tpu_custom_call.1} parent=5 // pred_region
        // Predicated region
        $region25: #{tpu_custom_call.1} parent=23 // pred_check
          %p160 = pneg %p48
        $region26: #{tpu_custom_call.1} parent=23 // pred_check_branch
          %162 = sbr.rel (%p160) target = $region28
        $region27: #{tpu_custom_call.1} parent=23 // pred_region
          %s163 = sand.u32 %s38, 1
          %s164 = scalar_lea.sflag [#allocation4], %s163
          %s165 = sand.u32 %s38, 1
          %s166 = smul.addr %s165, 8
          %s167 = scalar_lea.vmem [#allocation3], %s166
          %169 = vsyncadd %s164, 0
          %s170 = smul.addr %s23, 8
          %s171 = scalar_lea.hbm %s0, %s170
          %s173 = sshll.u32 %s171, 4
          %s174 = int_to_ptr.hbm [resolvable:$true] %s173
          %s175 = sshll.u32 %s167, 4
          %s176 = int_to_ptr.vmem [resolvable:$true] %s175
          %178 = dma.hbm_to_vmem [thread:$0]  %s174, 128, %s176, %s164
        $region28: #{tpu_custom_call.1} parent=23 // pred_fallthru
          _
      $region24: #{tpu_custom_call.1} parent=5 // pred_fallthru
        _
      %p179 = scmp.le.s32.totalorder 1, %s16
      %p180 = scmp.lt.s32.totalorder %s16, 3
      %p181 = pnand %p179, %p180
      %p182 = pneg %p181
      // Predicated region
      $region29: #{tpu_custom_call.1} parent=5 // pred_check
        _
      $region30: #{tpu_custom_call.1} parent=5 // pred_check_branch
        %184 = sbr.rel (%p181) target = $region32
      $region31: #{tpu_custom_call.1} parent=5 // pred_region
        %s185 = ssub.s32 %s16, 1
        %s186 = sand.u32 %s41, 1
        %s187 = scalar_lea.sflag [#allocation4], %s186
        %s188 = sand.u32 %s41, 1
        %s189 = smul.addr %s188, 8
        %s190 = scalar_lea.vmem [#allocation3], %s189
        // Predicated region
        $region33: #{tpu_custom_call.1} parent=31 // pred_check
          %p191 = pneg %p54
        $region34: #{tpu_custom_call.1} parent=31 // pred_check_branch
          %193 = sbr.rel (%p191) target = $region36
        $region35: #{tpu_custom_call.1} parent=31 // pred_region
          %195 = dma.done %s187, 128
        $region36: #{tpu_custom_call.1} parent=31 // pred_fallthru
          _
        // Predicated region
        $region37: #{tpu_custom_call.1} parent=31 // pred_check
          %p196 = pneg %p75
        $region38: #{tpu_custom_call.1} parent=31 // pred_check_branch
          %198 = sbr.rel (%p196) target = $region40
        $region39: #{tpu_custom_call.1} parent=31 // pred_region
          %200 = dma.done [#allocation7], 512
        $region40: #{tpu_custom_call.1} parent=31 // pred_fallthru
          _
        %s201 = sand.u32 %s41, 1
        %s202 = scalar_lea.sflag [#allocation4], %s201
        %s203 = sand.u32 %s41, 1
        %s204 = smul.addr %s203, 8
        %s205 = scalar_lea.vmem [#allocation3], %s204
        %p206 = pneg %p54
        %p207 = pneg %p51
        %p208 = pneg %p75
        %p209 = pneg %p72
        %p210 = pneg %p96
        %p211 = pneg %p93
        %p212 = pneg %p124
        %p213 = pneg %p121
        %s214 = sand.u32 %s111, 1
        %s215 = scalar_lea.sflag [#allocation5], %s214
        %s216 = sand.u32 %s111, 1
        %s217 = smul.addr %s216, 64
        %s218 = scalar_lea.vmem [#allocation8], %s217
        %s219 = smul.u32 8, %s26
        %v220 = vld [vmem:[%s190] sm:$0xff]
        %v221 = vld [vmem:[#allocation6] sm:$0xff]
        %v222 = vld [vmem:[#allocation6 + $0x8] sm:$0xff]
        %v223 = vld [vmem:[#allocation6 + $0x10] sm:$0xff]
        %v224 = vld [vmem:[#allocation6 + $0x18] sm:$0xff]
        %vm225 = vcmask 261120
        %v227 = vsel %vm225, %v220, 0
        %229 = vmatpush.msra.mxu0 0.0
        %230 = vmatpush.msra.mxu0 0.0
        %231 = vmatpush.msra.mxu0 0.0
        %232 = vmatpush.msra.mxu0 0.0
        %233 = vmatpush.msra.mxu0 0.0
        %234 = vmatpush.msra.mxu0 0.0
        %235 = vmatpush.msra.mxu0 0.0
        %236 = vmatpush.msra.mxu0 0.0
        %237 = vmatpush.msra.mxu0 0.0
        %238 = vmatpush.msra.mxu0 0.0
        %239 = vmatpush.msra.mxu0 0.0
        %240 = vmatpush.msra.mxu0 0.0
        %241 = vmatpush.msra.mxu0 %v224
        %242 = vmatpush.msra.mxu0 %v223
        %243 = vmatpush.msra.mxu0 %v222
        %244 = vmatpush.msra.mxu0 %v221
        %245 = vmatmul.f32.gmra.mxu0 %v227
        %v246 = vpop.f32.mrf.mxu0
        %v247 = vadd.f32 0.0, %v246
        %248 = vdwg.mxu0
        %249 = vst.msk [vmem:[#allocation2] sm:$0xff] %vm225, %v247
        %v250 = vld [vmem:[%s2] sm:$0x1]
        %v252 = vperm.slane %v250, 0
        %253 = vrot.lane.b32.xlu0 %v252, 32
        %v254 = vpop.permute.xlu0 %253
        %v256 = vadd.f32 %v247, %v254
        %s257 = smul.u32 %s26, 8
        %s258 = scalar_lea.vmem [#allocation2], %s257
        %v259 = vld [vmem:[%s258] sm:$0xff]
        %v261 = vrot.slane %v259, 1
        %v262 = vrot.slane %v259, 2
        %v263 = vrot.slane %v259, 3
        %v264 = vrot.slane %v259, 4
        %v265 = vrot.slane %v259, 5
        %v266 = vrot.slane %v259, 6
        %v267 = vrot.slane %v259, 7
        %v268 = vperm.slane %v259, 0
        %v269 = vperm.slane %v261, 0
        %v270 = vperm.slane %v262, 0
        %v271 = vperm.slane %v263, 0
        %v272 = vperm.slane %v264, 0
        %v273 = vperm.slane %v265, 0
        %v274 = vperm.slane %v266, 0
        %v275 = vperm.slane %v267, 0
        %285 = vrot.lane.b32.xlu0 %v256, 96
        %v286 = vpop.permute.xlu0 %285
        %v288 = vadd.f32 %v268, %v286
        %v289 = vadd.f32 %v269, %v286
        %v290 = vadd.f32 %v270, %v286
        %v291 = vadd.f32 %v271, %v286
        %v292 = vadd.f32 %v272, %v286
        %v293 = vadd.f32 %v273, %v286
        %v294 = vadd.f32 %v274, %v286
        %v295 = vadd.f32 %v275, %v286
        %v296 = vtanh.pop %v288
        %v297 = vtanh.pop %v289
        %v298 = vtanh.pop %v290
        %v299 = vtanh.pop %v291
        %v300 = vtanh.pop %v292
        %v301 = vtanh.pop %v293
        %v302 = vtanh.pop %v294
        %v303 = vtanh.pop %v295
        %304 = vst.msk [vmem:[%s218] sm:$0xff] %vm225, %v296
        %305 = vst.msk [vmem:[%s218 + $0x8] sm:$0xff] %vm225, %v297
        %306 = vst.msk [vmem:[%s218 + $0x10] sm:$0xff] %vm225, %v298
        %307 = vst.msk [vmem:[%s218 + $0x18] sm:$0xff] %vm225, %v299
        %308 = vst.msk [vmem:[%s218 + $0x20] sm:$0xff] %vm225, %v300
        %309 = vst.msk [vmem:[%s218 + $0x28] sm:$0xff] %vm225, %v301
        %310 = vst.msk [vmem:[%s218 + $0x30] sm:$0xff] %vm225, %v302
        %311 = vst.msk [vmem:[%s218 + $0x38] sm:$0xff] %vm225, %v303
        %s312 = sand.u32 %s111, 1
        %s313 = scalar_lea.sflag [#allocation5], %s312
        %s314 = sand.u32 %s111, 1
        %s315 = smul.addr %s314, 64
        %s316 = scalar_lea.vmem [#allocation8], %s315
        // Predicated region
        $region41: #{tpu_custom_call.1} parent=31 // pred_check
          %p317 = pneg %p121
        $region42: #{tpu_custom_call.1} parent=31 // pred_check_branch
          %319 = sbr.rel (%p317) target = $region44
        $region43: #{tpu_custom_call.1} parent=31 // pred_region
          %s320 = smul.u32 8, %s26
          %322 = vsyncadd %s313, 0
          %s323 = smul.addr %s25, 8
          %s324 = sadd.s32 %s320, %s323
          %s325 = smul.addr %s324, 8
          %s326 = scalar_lea.hbm %s3, %s325
          %s327 = sshll.u32 %s316, 4
          %s328 = int_to_ptr.vmem [resolvable:$true] %s327
          %s329 = sshll.u32 %s326, 4
          %s330 = int_to_ptr.hbm [resolvable:$true] %s329
          %335 = dma.vmem_to_hbm [thread:$0]  %s328, 1024, %s330, %s313, 128, 128, 8
        $region44: #{tpu_custom_call.1} parent=31 // pred_fallthru
          _
      $region32: #{tpu_custom_call.1} parent=5 // pred_fallthru
        _
      %p336 = scmp.le.s32.totalorder 2, %s16
      // Predicated region
      $region45: #{tpu_custom_call.1} parent=5 // pred_check
        %p337 = pneg %p336
      $region46: #{tpu_custom_call.1} parent=5 // pred_check_branch
        %339 = sbr.rel (%p337) target = $region48
      $region47: #{tpu_custom_call.1} parent=5 // pred_region
        %s340 = ssub.s32 %s16, 2
        // Predicated region
        $region49: #{tpu_custom_call.1} parent=47 // pred_check
          %p341 = pneg %p127
        $region50: #{tpu_custom_call.1} parent=47 // pred_check_branch
          %343 = sbr.rel (%p341) target = $region52
        $region51: #{tpu_custom_call.1} parent=47 // pred_region
          %s344 = sand.u32 %s112, 1
          %s345 = scalar_lea.sflag [#allocation5], %s344
          %s346 = sand.u32 %s112, 1
          %s347 = smul.addr %s346, 64
          %s348 = scalar_lea.vmem [#allocation8], %s347
          %350 = dma.done %s345, 1024
        $region52: #{tpu_custom_call.1} parent=47 // pred_fallthru
          _
      $region48: #{tpu_custom_call.1} parent=5 // pred_fallthru
        _
    $region6: #{tpu_custom_call.1} parent=1 // loop_footer
      %s20 = sadd.s32 1, %s16
    $region7: #{tpu_custom_call.1} parent=1 // loop_footer_branch
      %15 = sbr.rel target = $region3
    $region8: #{tpu_custom_call.1} parent=1 // loop_exit
      _
    %351 = vsyncpa [#allocation4], 1
    %s352 = scalar_lea.sflag [#allocation4], 1
    %353 = vsyncpa %s352, 1
    %354 = vsyncpa [#allocation7], 1
    %355 = vsyncpa [#allocation5], 1
    %s356 = scalar_lea.sflag [#allocation5], 1
    %357 = vsyncpa %s356, 1

</llo_original>
